<compile_context>
chip_gen: v6e
topology: v6e:2x2x1
jax: 0.10.0
libtpu: 0.0.40
codegen_flags: <defaults>
</compile_context>

<pallas_src>
import jax
import jax.numpy as jnp
import numpy as np
from jax import lax
from jax.experimental import pallas as pl
from jax.experimental.pallas import tpu as pltpu


def _round_up(v, m):
    return (v + m - 1) // m * m


N_MEL_BANDS = 96          # H
N_FRAMES = 128            # W  (lin(1792, 11) => W // 32 == 4)
POOL_W = 32
WQ = N_FRAMES // POOL_W   # 4
LANE_PACK = 2             # images packed along lanes per grid step (matmul N dim = 256)

M_SIZES = [50, 80]
N_SIZES = [1, 3, 5]
N_FILTERS = [128, 64, 32]
BN_EPS = 1e-5

HB = 16                                    # output-height rows per height block / grid step
M_MAX = max(M_SIZES)                       # 80
D_BLK = HB + M_MAX - 1                     # 95 input rows one height block touches
DP = _round_up(D_BLK, 16)                  # 96 (bf16 sublane-pack friendly)
NBLK = N_MEL_BANDS // HB                   # 6 height blocks
PH0 = (M_MAX - 1) // 2                     # 39, 'same' top pad of the tallest kernel
PH1 = (M_MAX - 1) - PH0                    # 40
HP_EXT = (NBLK - 1) * HB + DP              # 176 >= PH0 + H + PH1 = 175
PW_MAX = (max(N_SIZES) - 1) // 2           # 2, 'same' left/right pad of the widest kernel
assert N_MEL_BANDS % HB == 0 and HP_EXT >= PH0 + N_MEL_BANDS + PH1

VMEM_LIMIT_BYTES = 48 * 1024 * 1024        # <= v7x 64 MiB physical VMEM per TensorCore


def _layer_static_cfg():
    cfg = []
    for m in M_SIZES:
        for i, n in enumerate(N_SIZES):
            cfg.append((m, n, N_FILTERS[i]))
    return cfg


# ----------------------------------------------------------------------------------------
# pipeline_mode=pl.Buffered(1) support probe (grid-invariant inputs -> single buffer)
# ----------------------------------------------------------------------------------------
_SINGLE_BUFFER_OK = None


def _single_buffer_supported():
    """Probe once (eagerly, outside any jit trace) whether single-buffered BlockSpecs
    (pipeline_mode=pl.Buffered(1)) compile and run on this Pallas/Mosaic install."""
    global _SINGLE_BUFFER_OK
    if _SINGLE_BUFFER_OK is None:
        try:
            def _k(x_ref, o_ref):
                o_ref[...] = x_ref[...] + 1.0

            fn = pl.pallas_call(
                _k,
                out_shape=jax.ShapeDtypeStruct((8, 128), jnp.float32),
                grid_spec=pltpu.PrefetchScalarGridSpec(
                    num_scalar_prefetch=0,
                    grid=(1,),
                    in_specs=[pl.BlockSpec((8, 128), lambda i: (0, 0),
                                           pipeline_mode=pl.Buffered(1))],
                    out_specs=pl.BlockSpec((8, 128), lambda i: (0, 0)),
                ),
            )
            jax.block_until_ready(fn(jnp.zeros((8, 128), jnp.float32)))
            _SINGLE_BUFFER_OK = True
        except Exception:
            _SINGLE_BUFFER_OK = False
    return _SINGLE_BUFFER_OK


def _invariant_spec(shape, index_map):
    """BlockSpec for a grid-invariant operand: single-buffered when supported."""
    if _single_buffer_supported():
        return pl.BlockSpec(shape, index_map, pipeline_mode=pl.Buffered(1))
    return pl.BlockSpec(shape, index_map)


# ----------------------------------------------------------------------------------------
# Pallas kernels
# ----------------------------------------------------------------------------------------
def _make_conv_kernel(C2, hb, lanes, wq_lanes, pool_w):
    def kernel(xb_ref, wband_ref, shift_ref, out_ref, mx_ref):
        # xb_ref   : (1, 1, K, lanes)  bf16  one height-block of stacked shifted input taps
        # wband_ref: (C2*hb, K)        bf16  block-banded weights, BN scale folded in
        # shift_ref: (C2, 1)           f32   folded conv-bias + BN shift (per channel)
        # out_ref  : (1, C2, wq_lanes) f32   pooled + shifted + ELU features
        # mx_ref   : (C2, wq_lanes)    f32   running max across height blocks (scratch)
        j = pl.program_id(1)
        acc = jnp.dot(wband_ref[...], xb_ref[0, 0],
                      preferred_element_type=jnp.float32)            # (C2*hb, lanes)
        # MaxPool height: max over this block's hb rows (cheap sublane max) ...
        pm = jnp.max(acc.reshape(C2, hb, lanes), axis=1)              # (C2, lanes)
        # ... then max over 32-wide W lane groups (per packed image).
        pm = jnp.max(pm.reshape(C2, wq_lanes, pool_w), axis=2)        # (C2, wq_lanes)

        @pl.when(j == 0)
        def _():
            mx_ref[...] = pm

        @pl.when(j > 0)
        def _():
            mx_ref[...] = jnp.maximum(mx_ref[...], pm)

        @pl.when(j == pl.num_programs(1) - 1)
        def _():
            # ELU is monotonic and the shift is a per-channel constant, so both commute
            # with the max pooling and run on the tiny pooled tile only.
            z = mx_ref[...] + shift_ref[...]
            out_ref[0] = jnp.where(z > 0.0, z, jnp.exp(jnp.minimum(z, 0.0)) - 1.0)

    return kernel


def conv_bn_elu_pool(x_blk, wband, shift, *, C2):
    """x_blk: (B2, NBLK, K, LANE_PACK*W) bf16; wband: (C2*HB, K) bf16; shift: (C2, 1) f32."""
    B2, nblk, K, lanes = x_blk.shape
    wq_lanes = lanes // POOL_W
    kernel = _make_conv_kernel(C2, HB, lanes, wq_lanes, POOL_W)
    return pl.pallas_call(
        kernel,
        out_shape=jax.ShapeDtypeStruct((B2, C2, wq_lanes), jnp.float32),
        grid_spec=pltpu.PrefetchScalarGridSpec(
            num_scalar_prefetch=0,
            grid=(B2, nblk),
            in_specs=[
                pl.BlockSpec((1, 1, K, lanes), lambda b, j: (b, j, 0, 0)),
                _invariant_spec((C2 * HB, K), lambda b, j: (0, 0)),
                _invariant_spec((C2, 1), lambda b, j: (0, 0)),
            ],
            out_specs=pl.BlockSpec((1, C2, wq_lanes), lambda b, j: (b, 0, 0)),
            scratch_shapes=[pltpu.VMEM((C2, wq_lanes), jnp.float32)],
        ),
        compiler_params=pltpu.CompilerParams(
            dimension_semantics=("parallel", "arbitrary"),
            vmem_limit_bytes=VMEM_LIMIT_BYTES,
        ),
    )(x_blk, wband, shift)


def _linear_kernel(x_ref, w_ref, b_ref, o_ref):
    o_ref[...] = (jnp.dot(x_ref[...], w_ref[...],
                          preferred_element_type=jnp.float32) + b_ref[...])


def linear(x, w_t, b):
    B, F = x.shape
    O = w_t.shape[1]
    return pl.pallas_call(
        _linear_kernel,
        out_shape=jax.ShapeDtypeStruct((B, O), jnp.float32),
        grid_spec=pltpu.PrefetchScalarGridSpec(
            num_scalar_prefetch=0,
            grid=(1,),
            in_specs=[
                pl.BlockSpec((B, F), lambda i: (0, 0)),
                pl.BlockSpec((F, O), lambda i: (0, 0)),
                pl.BlockSpec((1, O), lambda i: (0, 0)),
            ],
            out_specs=pl.BlockSpec((B, O), lambda i: (0, 0)),
        ),
        compiler_params=pltpu.CompilerParams(vmem_limit_bytes=VMEM_LIMIT_BYTES),
    )(x, w_t, b.reshape(1, O))


# ----------------------------------------------------------------------------------------
# One-time parameter preparation (hoisted out of the forward, device resident)
# ----------------------------------------------------------------------------------------
def _build_block_band(conv_w, scale_c, offset):
    """conv_w: (C, 1, m, n).  Block-banded weights for ONE height block of HB output rows,
    with the per-channel BN scale folded in, shifted down by `offset` rows so kernels shorter
    than M_MAX reuse the M_MAX-padded input slab:
      band[c*HB + hb, dw*DP + d] = scale_c[c]*conv_w[c,0,d-hb-offset,dw]  (0<=d-hb-offset<m).
    Returns (C*HB, n*DP)."""
    C, _, m, n = conv_w.shape
    hb = jnp.arange(HB)[:, None]
    d = jnp.arange(DP)[None, :]
    delta = d - hb - offset
    valid = (delta >= 0) & (delta < m)
    dcl = jnp.clip(delta, 0, m - 1)
    bands = []
    for dw in range(n):
        k = conv_w[:, 0, :, dw] * scale_c[:, None]            # (C, m), scale folded in
        wb = jnp.where(valid[None], k[:, dcl], 0.0)           # (C, HB, DP)
        bands.append(wb.reshape(C * HB, DP))
    return jnp.concatenate(bands, axis=1)                     # (C*HB, n*DP)


@jax.jit
def prepare_params(conv_params):
    """Fold conv bias + inference BatchNorm into block-banded weights (scale) and per-channel
    shifts, pair the m=50/m=80 layers that share the same width n, cast weights to bf16."""
    prepped = []
    for i in range(len(N_SIZES)):
        bands, shifts = [], []
        for m, li in ((M_SIZES[0], i), (M_SIZES[1], i + len(N_SIZES))):
            p = conv_params[li]
            scale_c = p["gamma"] / jnp.sqrt(p["var"] + BN_EPS)            # (C,)
            shift_c = (p["b"] - p["mean"]) * scale_c + p["beta"]          # (C,)
            offset = PH0 - (m - 1) // 2        # 15 for m=50, 0 for m=80
            bands.append(_build_block_band(p["w"], scale_c, offset))
            shifts.append(shift_c)
        prepped.append(dict(
            wband=jnp.concatenate(bands, axis=0).astype(jnp.bfloat16),    # (2C*HB, n*DP)
            shift=jnp.concatenate(shifts).reshape(-1, 1).astype(jnp.float32)))  # (2C, 1)
    return prepped


# ----------------------------------------------------------------------------------------
# Forward pass (Pallas) and pure-JAX reference
# ----------------------------------------------------------------------------------------
@jax.jit
def single_layer_forward(x, prepped, lin_w_t, lin_b):
    B, cin, H, W = x.shape
    assert cin == 1 and H == N_MEL_BANDS and W == N_FRAMES
    Bp = _round_up(B, LANE_PACK)
    B2 = Bp // LANE_PACK
    x2d = x[:, 0]
    if Bp != B:
        x2d = jnp.pad(x2d, ((0, Bp - B), (0, 0), (0, 0)))
    # One shared padded slab: 'same' height padding of the tallest kernel (m=80) plus one
    # extra zero row so the last height block can read DP rows; width padded for n=5.
    xpad = jnp.pad(x2d, ((0, 0), (PH0, HP_EXT - PH0 - H), (PW_MAX, PW_MAX)))
    feats = [None] * (2 * len(N_SIZES))
    for i, n in enumerate(N_SIZES):
        C = N_FILTERS[i]
        woff = PW_MAX - (n - 1) // 2
        # Width taps, then overlapping height blocks, ordered (dw outer, d inner) to match
        # the banded weights' contraction layout; LANE_PACK images packed along lanes.
        taps = jnp.stack([xpad[:, :, woff + dw: woff + dw + W] for dw in range(n)],
                         axis=1)                                         # (Bp, n, HP_EXT, W)
        xblk = jnp.stack([taps[:, :, j * HB: j * HB + DP, :] for j in range(NBLK)],
                         axis=1)                                         # (Bp,NBLK,n,DP,W)
        xblk = xblk.reshape(Bp, NBLK, n * DP, W)
        xblk = (xblk.reshape(B2, LANE_PACK, NBLK, n * DP, W)
                    .transpose(0, 2, 3, 1, 4)
                    .reshape(B2, NBLK, n * DP, LANE_PACK * W)
                    .astype(jnp.bfloat16))
        pooled = conv_bn_elu_pool(xblk, prepped[i]["wband"], prepped[i]["shift"],
                                  C2=2 * C)                              # (B2, 2C, 8)
        for half, li in ((0, i), (1, i + len(N_SIZES))):
            pc = pooled[:, half * C:(half + 1) * C]                      # (B2, C, 8)
            pc = pc.reshape(B2, C, LANE_PACK, WQ).transpose(0, 2, 1, 3)  # (B2, LP, C, WQ)
            feats[li] = pc.reshape(Bp, C * WQ)[:B]     # torch.flatten((B,C,1,WQ)) order
    feat = jnp.concatenate(feats, axis=1)                                # (B, 1792)
    # TODO(synk): nn.Dropout(0.5) applied as eval-mode identity (no random mask);
    # nn.BatchNorm2d implemented in inference mode with fixed running stats;
    # nn.Softmax is defined in __init__ but never applied in forward -> raw logits returned.
    return linear(feat, lin_w_t, lin_b)                                  # (B, 11)


def init_params(key):
    params = []
    for (m, n, C) in _layer_static_cfg():
        key, k1, k2, k3, k4, k5, k6 = jax.random.split(key, 7)
        params.append(dict(
            w=jax.random.normal(k1, (C, 1, m, n), jnp.float32) * 0.05,
            b=jax.random.normal(k2, (C,), jnp.float32) * 0.05,
            gamma=1.0 + 0.1 * jax.random.normal(k3, (C,), jnp.float32),
            beta=0.1 * jax.random.normal(k4, (C,), jnp.float32),
            mean=0.1 * jax.random.normal(k5, (C,), jnp.float32),
            var=1.0 + 0.1 * jax.random.uniform(k6, (C,), jnp.float32),
        ))
    key, kl1, kl2 = jax.random.split(key, 3)
    lin_w = jax.random.normal(kl1, (11, 1792), jnp.float32) * 0.02
    lin_b = jax.random.normal(kl2, (11,), jnp.float32) * 0.02
    return params, lin_w, lin_b


def reference_forward(x, conv_params, lin_w, lin_b):
    B = x.shape[0]
    feats = []
    for p in conv_params:
        C, _, m, n = p["w"].shape
        ph0, pw0 = (m - 1) // 2, (n - 1) // 2
        ph1, pw1 = (m - 1) - ph0, (n - 1) - pw0
        y = lax.conv_general_dilated(
            x, p["w"], window_strides=(1, 1),
            padding=((ph0, ph1), (pw0, pw1)),
            dimension_numbers=("NCHW", "OIHW", "NCHW"),
            precision=lax.Precision.HIGHEST)
        y = y + p["b"][None, :, None, None]
        y = (y - p["mean"][None, :, None, None]) / jnp.sqrt(p["var"] + BN_EPS)[None, :, None, None]
        y = y * p["gamma"][None, :, None, None] + p["beta"][None, :, None, None]
        y = jnp.where(y > 0.0, y, jnp.exp(jnp.minimum(y, 0.0)) - 1.0)
        y = y.reshape(B, C, 1, N_MEL_BANDS, WQ, POOL_W).max(axis=(3, 5))     # (B, C, 1, WQ)
        feats.append(y.reshape(B, C * WQ))
    feat = jnp.concatenate(feats, axis=1)
    return feat @ lin_w.T + lin_b


if __name__ == "__main__":
    key = jax.random.PRNGKey(0)
    kx, kp = jax.random.split(key)
    x = jax.random.normal(kx, (2, 1, N_MEL_BANDS, N_FRAMES), jnp.float32)
    conv_params, lin_w, lin_b = init_params(kp)

    # Probe Buffered(1) support eagerly (outside any jit trace), then prep weights once.
    _single_buffer_supported()
    prepped = jax.block_until_ready(prepare_params(conv_params))
    lin_w_t = jnp.asarray(lin_w.T)

    out = jax.block_until_ready(single_layer_forward(x, prepped, lin_w_t, lin_b))
    assert out.shape == (2, 11), out.shape

    ref = jax.block_until_ready(reference_forward(x, conv_params, lin_w, lin_b))
    out_np, ref_np = np.asarray(out), np.asarray(ref)
    if not np.allclose(out_np, ref_np, rtol=2e-2, atol=2e-2):
        raise AssertionError(
            f"Pallas output mismatch: max abs err = {np.max(np.abs(out_np - ref_np))}")

    print("KERNEL_OK")
</pallas_src>

<mosaic_0001>
module attributes {stable_mosaic.version = 11 : i64} {
  func.func @_k(%arg0: i32, %arg1: memref<8x128xf32, #tpu.memory_space<vmem>>, %arg2: memref<8x128xf32, #tpu.memory_space<vmem>>) attributes {dimension_semantics = [#tpu.dimension_semantics<arbitrary>], iteration_bounds = array<i64: 1>, scalar_prefetch = 0 : i64, scratch_operands = 0 : i64, tpu.core_type = #tpu.core_type<tc>, window_params = [{pipeline_mode = #tpu.pipeline_mode<synchronous>, transform_indices = @transform_0, window_bounds = array<i64: 8, 128>}, {pipeline_mode = #tpu.pipeline_mode<synchronous>, transform_indices = @transform_1, window_bounds = array<i64: 8, 128>}]} {
    %c0 = arith.constant 0 : index
    %c0_0 = arith.constant 0 : index
    %0 = vector.load %arg1[%c0, %c0_0] : memref<8x128xf32, #tpu.memory_space<vmem>>, vector<8x128xf32>
    %cst = arith.constant 1.000000e+00 : f32
    %1 = vector.broadcast %cst : f32 to vector<8x128xf32>
    %2 = arith.addf %0, %1 : vector<8x128xf32>
    %c0_1 = arith.constant 0 : index
    %c0_2 = arith.constant 0 : index
    %3 = vector.load %arg2[%c0_1, %c0_2] : memref<8x128xf32, #tpu.memory_space<vmem>>, vector<8x128xf32>
    tpu.vector_store %arg2[%c0_1, %c0_2], %2 {strides = array<i32>} : memref<8x128xf32, #tpu.memory_space<vmem>>, vector<8x128xf32>,
    return
  }
  func.func @transform_0(%arg0: i32) -> (i32, i32) {
    %c0_i32 = arith.constant 0 : i32
    %c0_i32_0 = arith.constant 0 : i32
    %c0_i32_1 = arith.constant 0 : i32
    return %c0_i32, %c0_i32_0 : i32, i32
  }
  func.func @transform_1(%arg0: i32) -> (i32, i32) {
    %c0_i32 = arith.constant 0 : i32
    %c0_i32_0 = arith.constant 0 : i32
    %c0_i32_1 = arith.constant 0 : i32
    return %c0_i32, %c0_i32_0 : i32, i32
  }
}

</mosaic_0001>

<llo_original>
// kernel: tpu_custom_call.1
$region0: #{tpu_custom_call.1}
  #allocation0 [shape = 'u32[]', space=smem, size = 0x4, offset = 0x4, fixed_abs, tag = 'smem constant byte address 0x4 - core index']
  #allocation1 [shape = 'u32[144,128]{1,0:T(1,128)}', space=vmem, size = 0x12000, scoped, tag = 'internal scratch']
  %s0 = inlined_call_operand.hbm [shape: f32[8,128], index: 0, kind: input, shape index: {}]
  %s1 = inlined_call_operand.hbm [shape: f32[8,128], index: 1, kind: output, shape index: {}]
  %s2 = sld [smem:[#allocation0]]
  $region18: #{tpu_custom_call.1} parent=0
    _
  %s4 = ssub.s32 1, %s2
  %s5 = scalar_select 0, %s4, %s2
  $region1: #{tpu_custom_call.1} parent=0
    #allocation2 [shape = 'u8[4096]{0}', space=vmem, size = 0x1000, scoped, tag = 'input window, operand 0, single buffered']
    #allocation3 [shape = 's32[1]{0}', space=sflag, size = 0x4, scoped, tag = 'scoped memory for tpu_custom_call.1']
    #allocation4 [shape = 's32[1]{0}', space=sflag, size = 0x4, scoped, tag = 'scoped memory for tpu_custom_call.1']
    #allocation5 [shape = 'u8[4096]{0}', space=vmem, size = 0x1000, scoped, tag = 'output window, operand 0, single buffered']
    %6 = vsyncpa [#allocation3], 0
    %7 = vsyncpa [#allocation4], 0
    // Predicated region
    $region2: #{tpu_custom_call.1} parent=1 // pred_check
      _
    $region3: #{tpu_custom_call.1} parent=1 // pred_check_branch
      %9 = sbr.rel (0) target = $region5
    $region4: #{tpu_custom_call.1} parent=1 // pred_region
      %s11 = ssub.s32 128, 128
      %12 = vsyncadd [#allocation3], %s11
      %s14 = sshll.u32 [#allocation2], 4
      %s15 = int_to_ptr.vmem [resolvable:$true] %s14
      %17 = dma.hbm_to_vmem [thread:$0]  %s0, 128, %s15, [#allocation3]
    $region5: #{tpu_custom_call.1} parent=1 // pred_fallthru
      _
    // Predicated region
    $region6: #{tpu_custom_call.1} parent=1 // pred_check
      _
    $region7: #{tpu_custom_call.1} parent=1 // pred_check_branch
      %19 = sbr.rel (0) target = $region9
    $region8: #{tpu_custom_call.1} parent=1 // pred_region
      %20 = dma.done [#allocation3], 128
    $region9: #{tpu_custom_call.1} parent=1 // pred_fallthru
      _
    %v21 = vld [vmem:[#allocation2] sm:$0xff]
    %v22 = vadd.f32 %v21, 1.0
    %23 = vst [vmem:[#allocation5] sm:$0xff] %v22
    // Predicated region
    $region10: #{tpu_custom_call.1} parent=1 // pred_check
      _
    $region11: #{tpu_custom_call.1} parent=1 // pred_check_branch
      %25 = sbr.rel (0) target = $region13
    $region12: #{tpu_custom_call.1} parent=1 // pred_region
      %s27 = ssub.s32 128, 128
      %28 = vsyncadd [#allocation4], %s27
      %s30 = sshll.u32 [#allocation5], 4
      %s31 = int_to_ptr.vmem [resolvable:$true] %s30
      %33 = dma.vmem_to_hbm [thread:$0]  %s31, 128, %s1, [#allocation4]
    $region13: #{tpu_custom_call.1} parent=1 // pred_fallthru
      _
    // Predicated region
    $region14: #{tpu_custom_call.1} parent=1 // pred_check
      _
    $region15: #{tpu_custom_call.1} parent=1 // pred_check_branch
      %35 = sbr.rel (0) target = $region17
    $region16: #{tpu_custom_call.1} parent=1 // pred_region
      %36 = dma.done [#allocation4], 128
    $region17: #{tpu_custom_call.1} parent=1 // pred_fallthru
      _
    %37 = vsyncpa [#allocation3], 1
    %38 = vsyncpa [#allocation4], 1

</llo_original>
